<compile_context>
chip_gen: v7x
topology: tpu7x:2x2x1
jax: 0.10.0
libtpu: 0.0.40
codegen_flags: <defaults>
</compile_context>

<pallas_src>
from functools import partial

import jax
import jax.numpy as jnp
from jax.experimental import pallas as pl
from jax.experimental.pallas import tpu as pltpu

IN_FEATURES = 6 * 6   # fc1 input width
H1 = 128              # fc1 output
H2 = 64               # fc2 output
OUT_FEATURES = 4      # fc3 output width


def _round_up(x, m):
    return ((x + m - 1) // m) * m


def qnet_kernel(x_ref, w1_ref, b1_ref, w2_ref, b2_ref, w3_ref, b3_ref, o_ref):
    # x_ref: (TM, 36) batch tile; weights/biases are VMEM-resident across steps.
    x = x_ref[...]
    h1 = jnp.dot(x, w1_ref[...], preferred_element_type=jnp.float32) + b1_ref[...]
    h1 = jnp.maximum(h1, 0.0)                                  # ReLU
    h2 = jnp.dot(h1, w2_ref[...], preferred_element_type=jnp.float32) + b2_ref[...]
    h2 = jnp.maximum(h2, 0.0)                                  # ReLU
    o_ref[...] = jnp.dot(h2, w3_ref[...], preferred_element_type=jnp.float32) + b3_ref[...]


@partial(jax.jit, static_argnames=("tm",))
def qnetwork_forward(state, params, *, tm=2048):
    """state: (B, 6, 6) or (B, 36) float32. params: (w1,b1,w2,b2,w3,b3), weights
    stored (in, out). Returns Q-values (B, 4)."""
    w1, b1, w2, b2, w3, b3 = params

    B = state.shape[0]
    x = state.reshape(B, -1).astype(jnp.float32)               # == state.view(B, -1)

    # Batch tile: multiple of 8, capped at `tm`, and at ceil(B/2) rounded to 8 so
    # the grid has >= 2 steps whenever B > 8 (keeps both v7x TensorCores busy).
    half = _round_up(max(1, -(-B // 2)), 8)
    TM = max(8, min(_round_up(tm, 8), half))

    # Pad rows only to a multiple of 8 (never to a multiple of TM); Pallas masks
    # the ragged last block.  Garbage rows are row-independent and never stored
    # into the returned slice.
    B_pad = _round_up(B, 8)
    x = jnp.pad(x, ((0, B_pad - B), (0, 0)))

    out = pl.pallas_call(
        qnet_kernel,
        out_shape=jax.ShapeDtypeStruct((B_pad, OUT_FEATURES), jnp.float32),
        grid=(pl.cdiv(B_pad, TM),),
        in_specs=[
            pl.BlockSpec((TM, IN_FEATURES),  lambda i: (i, 0)),   # x: streamed
            pl.BlockSpec((IN_FEATURES, H1),  lambda i: (0, 0)),   # w1: resident
            pl.BlockSpec((1, H1),            lambda i: (0, 0)),   # b1
            pl.BlockSpec((H1, H2),           lambda i: (0, 0)),   # w2
            pl.BlockSpec((1, H2),            lambda i: (0, 0)),   # b2
            pl.BlockSpec((H2, OUT_FEATURES), lambda i: (0, 0)),   # w3
            pl.BlockSpec((1, OUT_FEATURES),  lambda i: (0, 0)),   # b3
        ],
        out_specs=pl.BlockSpec((TM, OUT_FEATURES), lambda i: (i, 0)),
        compiler_params=pltpu.CompilerParams(
            dimension_semantics=("parallel",),     # shard batch across TCs (v7x)
        ),
    )(x, w1, b1, w2, b2, w3, b3)

    return out[:B]


def init_params(key):
    """Mimics PyTorch nn.Linear default init U(-1/sqrt(fan_in), +); weights (in, out)."""
    def linear(k, fan_in, fan_out):
        kw, kb = jax.random.split(k)
        bound = 1.0 / jnp.sqrt(jnp.float32(fan_in))
        w = jax.random.uniform(kw, (fan_in, fan_out), jnp.float32, -bound, bound)
        b = jax.random.uniform(kb, (1, fan_out), jnp.float32, -bound, bound)
        return w, b

    k1, k2, k3 = jax.random.split(key, 3)
    w1, b1 = linear(k1, IN_FEATURES, H1)
    w2, b2 = linear(k2, H1, H2)
    w3, b3 = linear(k3, H2, OUT_FEATURES)
    return (w1, b1, w2, b2, w3, b3)


def _reference(state, params):
    w1, b1, w2, b2, w3, b3 = params
    x = state.reshape(state.shape[0], -1).astype(jnp.float32)
    x = jnp.maximum(x @ w1 + b1, 0.0)
    x = jnp.maximum(x @ w2 + b2, 0.0)
    return x @ w3 + b3


if __name__ == "__main__":
    key = jax.random.PRNGKey(0)
    kp, kx1, kx2 = jax.random.split(key, 3)

    params = init_params(kp)

    # Small single-step-grid case.
    state = jax.random.normal(kx1, (8, 6, 6), jnp.float32)
    out = jax.block_until_ready(qnetwork_forward(state, params))
    assert out.shape == (8, OUT_FEATURES)
    assert jnp.allclose(out, _reference(state, params), atol=1e-5, rtol=1e-5)

    # Multi-step grid with a ragged last block (B=24, TM=16 -> 2 steps, 2nd partial).
    state2 = jax.random.normal(kx2, (24, 6, 6), jnp.float32)
    out2 = jax.block_until_ready(qnetwork_forward(state2, params, tm=16))
    assert out2.shape == (24, OUT_FEATURES)
    assert jnp.allclose(out2, _reference(state2, params), atol=1e-5, rtol=1e-5)

    print("KERNEL_OK")
</pallas_src>

<mosaic_0001>
module attributes {stable_mosaic.version = 11 : i64} {
  func.func @qnet_kernel(%arg0: i32, %arg1: memref<8x36xf32, #tpu.memory_space<vmem>>, %arg2: memref<36x128xf32, #tpu.memory_space<vmem>>, %arg3: memref<1x128xf32, #tpu.memory_space<vmem>>, %arg4: memref<128x64xf32, #tpu.memory_space<vmem>>, %arg5: memref<1x64xf32, #tpu.memory_space<vmem>>, %arg6: memref<64x4xf32, #tpu.memory_space<vmem>>, %arg7: memref<1x4xf32, #tpu.memory_space<vmem>>, %arg8: memref<8x4xf32, #tpu.memory_space<vmem>>) attributes {dimension_semantics = [#tpu.dimension_semantics<parallel>], iteration_bounds = array<i64: 1>, scalar_prefetch = 0 : i64, scratch_operands = 0 : i64, tpu.core_type = #tpu.core_type<tc>, window_params = [{transform_indices = @transform_0, window_bounds = array<i64: 8, 36>}, {pipeline_mode = #tpu.pipeline_mode<synchronous>, transform_indices = @transform_1, window_bounds = array<i64: 36, 128>}, {pipeline_mode = #tpu.pipeline_mode<synchronous>, transform_indices = @transform_2, window_bounds = array<i64: 1, 128>}, {pipeline_mode = #tpu.pipeline_mode<synchronous>, transform_indices = @transform_3, window_bounds = array<i64: 128, 64>}, {pipeline_mode = #tpu.pipeline_mode<synchronous>, transform_indices = @transform_4, window_bounds = array<i64: 1, 64>}, {pipeline_mode = #tpu.pipeline_mode<synchronous>, transform_indices = @transform_5, window_bounds = array<i64: 64, 4>}, {pipeline_mode = #tpu.pipeline_mode<synchronous>, transform_indices = @transform_6, window_bounds = array<i64: 1, 4>}, {transform_indices = @transform_7, window_bounds = array<i64: 8, 4>}]} {
    %c0 = arith.constant 0 : index
    %c0_0 = arith.constant 0 : index
    %0 = vector.load %arg1[%c0, %c0_0] : memref<8x36xf32, #tpu.memory_space<vmem>>, vector<8x36xf32>
    %c0_1 = arith.constant 0 : index
    %c0_2 = arith.constant 0 : index
    %1 = vector.load %arg2[%c0_1, %c0_2] : memref<36x128xf32, #tpu.memory_space<vmem>>, vector<36x128xf32>
    %cst = arith.constant dense<0.000000e+00> : vector<8x128xf32>
    %2 = tpu.matmul %0, %1, %cst {dimension_numbers = #tpu.dot_dimension_numbers<[1], [0], [0], [1], [0, 0, 1, 1], [], []>} : vector<8x36xf32>, vector<36x128xf32>, vector<8x128xf32> -> vector<8x128xf32>
    %c0_3 = arith.constant 0 : index
    %c0_4 = arith.constant 0 : index
    %3 = vector.load %arg3[%c0_3, %c0_4] : memref<1x128xf32, #tpu.memory_space<vmem>>, vector<1x128xf32>
    %4 = vector.broadcast %3 : vector<1x128xf32> to vector<8x128xf32>
    %5 = arith.addf %2, %4 : vector<8x128xf32>
    %cst_5 = arith.constant 0.000000e+00 : f32
    %6 = vector.broadcast %cst_5 : f32 to vector<8x128xf32>
    %7 = arith.maximumf %5, %6 : vector<8x128xf32>
    %c0_6 = arith.constant 0 : index
    %c0_7 = arith.constant 0 : index
    %8 = vector.load %arg4[%c0_6, %c0_7] : memref<128x64xf32, #tpu.memory_space<vmem>>, vector<128x64xf32>
    %cst_8 = arith.constant dense<0.000000e+00> : vector<8x64xf32>
    %9 = tpu.matmul %7, %8, %cst_8 {dimension_numbers = #tpu.dot_dimension_numbers<[1], [0], [0], [1], [0, 0, 1, 1], [], []>} : vector<8x128xf32>, vector<128x64xf32>, vector<8x64xf32> -> vector<8x64xf32>
    %c0_9 = arith.constant 0 : index
    %c0_10 = arith.constant 0 : index
    %10 = vector.load %arg5[%c0_9, %c0_10] : memref<1x64xf32, #tpu.memory_space<vmem>>, vector<1x64xf32>
    %11 = vector.broadcast %10 : vector<1x64xf32> to vector<8x64xf32>
    %12 = arith.addf %9, %11 : vector<8x64xf32>
    %cst_11 = arith.constant 0.000000e+00 : f32
    %13 = vector.broadcast %cst_11 : f32 to vector<8x64xf32>
    %14 = arith.maximumf %12, %13 : vector<8x64xf32>
    %c0_12 = arith.constant 0 : index
    %c0_13 = arith.constant 0 : index
    %15 = vector.load %arg6[%c0_12, %c0_13] : memref<64x4xf32, #tpu.memory_space<vmem>>, vector<64x4xf32>
    %cst_14 = arith.constant dense<0.000000e+00> : vector<8x4xf32>
    %16 = tpu.matmul %14, %15, %cst_14 {dimension_numbers = #tpu.dot_dimension_numbers<[1], [0], [0], [1], [0, 0, 1, 1], [], []>} : vector<8x64xf32>, vector<64x4xf32>, vector<8x4xf32> -> vector<8x4xf32>
    %c0_15 = arith.constant 0 : index
    %c0_16 = arith.constant 0 : index
    %17 = vector.load %arg7[%c0_15, %c0_16] : memref<1x4xf32, #tpu.memory_space<vmem>>, vector<1x4xf32>
    %18 = vector.broadcast %17 : vector<1x4xf32> to vector<8x4xf32>
    %19 = arith.addf %16, %18 : vector<8x4xf32>
    %c0_17 = arith.constant 0 : index
    %c0_18 = arith.constant 0 : index
    %20 = vector.load %arg8[%c0_17, %c0_18] : memref<8x4xf32, #tpu.memory_space<vmem>>, vector<8x4xf32>
    tpu.vector_store %arg8[%c0_17, %c0_18], %19 {strides = array<i32>} : memref<8x4xf32, #tpu.memory_space<vmem>>, vector<8x4xf32>,
    return
  }
  func.func @transform_0(%arg0: i32) -> (i32, i32) {
    %c0_i32 = arith.constant 0 : i32
    %c0_i32_0 = arith.constant 0 : i32
    return %arg0, %c0_i32 : i32, i32
  }
  func.func @transform_1(%arg0: i32) -> (i32, i32) {
    %c0_i32 = arith.constant 0 : i32
    %c0_i32_0 = arith.constant 0 : i32
    %c0_i32_1 = arith.constant 0 : i32
    return %c0_i32, %c0_i32_0 : i32, i32
  }
  func.func @transform_2(%arg0: i32) -> (i32, i32) {
    %c0_i32 = arith.constant 0 : i32
    %c0_i32_0 = arith.constant 0 : i32
    %c0_i32_1 = arith.constant 0 : i32
    return %c0_i32, %c0_i32_0 : i32, i32
  }
  func.func @transform_3(%arg0: i32) -> (i32, i32) {
    %c0_i32 = arith.constant 0 : i32
    %c0_i32_0 = arith.constant 0 : i32
    %c0_i32_1 = arith.constant 0 : i32
    return %c0_i32, %c0_i32_0 : i32, i32
  }
  func.func @transform_4(%arg0: i32) -> (i32, i32) {
    %c0_i32 = arith.constant 0 : i32
    %c0_i32_0 = arith.constant 0 : i32
    %c0_i32_1 = arith.constant 0 : i32
    return %c0_i32, %c0_i32_0 : i32, i32
  }
  func.func @transform_5(%arg0: i32) -> (i32, i32) {
    %c0_i32 = arith.constant 0 : i32
    %c0_i32_0 = arith.constant 0 : i32
    %c0_i32_1 = arith.constant 0 : i32
    return %c0_i32, %c0_i32_0 : i32, i32
  }
  func.func @transform_6(%arg0: i32) -> (i32, i32) {
    %c0_i32 = arith.constant 0 : i32
    %c0_i32_0 = arith.constant 0 : i32
    %c0_i32_1 = arith.constant 0 : i32
    return %c0_i32, %c0_i32_0 : i32, i32
  }
  func.func @transform_7(%arg0: i32) -> (i32, i32) {
    %c0_i32 = arith.constant 0 : i32
    %c0_i32_0 = arith.constant 0 : i32
    return %arg0, %c0_i32 : i32, i32
  }
}

</mosaic_0001>

<llo_original>
// kernel: qnetwork_forward.1
$region0: #{qnetwork_forward.1}
  #allocation0 [shape = 'u32[]', space=smem, size = 0x4, offset = 0x4, fixed_abs, tag = 'smem constant byte address 0x4 - core index']
  #allocation1 [shape = 'u32[144,128]{1,0:T(1,128)}', space=vmem, size = 0x12000, scoped, tag = 'internal scratch']
  %s0 = inlined_call_operand.vmem [shape: f32[8,36], index: 0, kind: input, shape index: {}]
  %s1 = inlined_call_operand.vmem [shape: f32[36,128], index: 1, kind: input, shape index: {}]
  %s2 = inlined_call_operand.vmem [shape: f32[1,128], index: 2, kind: input, shape index: {}]
  %s3 = inlined_call_operand.vmem [shape: f32[128,64], index: 3, kind: input, shape index: {}]
  %s4 = inlined_call_operand.vmem [shape: f32[1,64], index: 4, kind: input, shape index: {}]
  %s5 = inlined_call_operand.vmem [shape: f32[64,4], index: 5, kind: input, shape index: {}]
  %s6 = inlined_call_operand.vmem [shape: f32[1,4], index: 6, kind: input, shape index: {}]
  %s7 = inlined_call_operand.vmem [shape: f32[8,4], index: 7, kind: output, shape index: {}]
  %s8 = sld [smem:[#allocation0]]
  $region38: #{qnetwork_forward.1} parent=0
    _
  %s10 = ssub.s32 1, %s8
  %s11 = scalar_select 0, %s10, %s8
  // Predicated region
  $region2: #{qnetwork_forward.1} parent=0 // pred_check
    _
  $region3: #{qnetwork_forward.1} parent=0 // pred_check_branch
    %13 = sbr.rel (0) target = $region5
  $region4: #{qnetwork_forward.1} parent=0 // pred_region
    _
  $region5: #{qnetwork_forward.1} parent=0 // pred_fallthru
    _
  // Predicated region
  $region6: #{qnetwork_forward.1} parent=0 // pred_check
    _
  $region7: #{qnetwork_forward.1} parent=0 // pred_check_branch
    %15 = sbr.rel (0) target = $region9
  $region8: #{qnetwork_forward.1} parent=0 // pred_region
    _
  $region9: #{qnetwork_forward.1} parent=0 // pred_fallthru
    _
  // Predicated region
  $region10: #{qnetwork_forward.1} parent=0 // pred_check
    _
  $region11: #{qnetwork_forward.1} parent=0 // pred_check_branch
    %17 = sbr.rel (0) target = $region13
  $region12: #{qnetwork_forward.1} parent=0 // pred_region
    _
  $region13: #{qnetwork_forward.1} parent=0 // pred_fallthru
    _
  // Predicated region
  $region14: #{qnetwork_forward.1} parent=0 // pred_check
    _
  $region15: #{qnetwork_forward.1} parent=0 // pred_check_branch
    %19 = sbr.rel (0) target = $region17
  $region16: #{qnetwork_forward.1} parent=0 // pred_region
    _
  $region17: #{qnetwork_forward.1} parent=0 // pred_fallthru
    _
  // Predicated region
  $region18: #{qnetwork_forward.1} parent=0 // pred_check
    _
  $region19: #{qnetwork_forward.1} parent=0 // pred_check_branch
    %21 = sbr.rel (0) target = $region21
  $region20: #{qnetwork_forward.1} parent=0 // pred_region
    _
  $region21: #{qnetwork_forward.1} parent=0 // pred_fallthru
    _
  // Predicated region
  $region22: #{qnetwork_forward.1} parent=0 // pred_check
    _
  $region23: #{qnetwork_forward.1} parent=0 // pred_check_branch
    %23 = sbr.rel (0) target = $region25
  $region24: #{qnetwork_forward.1} parent=0 // pred_region
    _
  $region25: #{qnetwork_forward.1} parent=0 // pred_fallthru
    _
  // Predicated region
  $region26: #{qnetwork_forward.1} parent=0 // pred_check
    _
  $region27: #{qnetwork_forward.1} parent=0 // pred_check_branch
    %25 = sbr.rel (0) target = $region29
  $region28: #{qnetwork_forward.1} parent=0 // pred_region
    _
  $region29: #{qnetwork_forward.1} parent=0 // pred_fallthru
    _
  %v26 = vld [vmem:[%s0] sm:$0xff]
  %v27 = vld [vmem:[%s1] sm:$0xff]
  %v28 = vld [vmem:[%s1 + $0x8] sm:$0xff]
  %v29 = vld [vmem:[%s1 + $0x10] sm:$0xff]
  %v30 = vld [vmem:[%s1 + $0x18] sm:$0xff]
  %v31 = vld [vmem:[%s1 + $0x20] sm:$0xf]
  %v32 = vld [vmem:[%s2] sm:$0x1]
  %v34 = vlaneseq
  %v35 = vshrl.u32 %v34, 7
  %v36 = vsub.s32 0, %v35
  %v37 = vrot.slane %v32, %v36
  %vm39 = vcmask 293888
  %v41 = vsel %vm39, %v26, 0
  %vm43 = vcmask 1043456
  %v45 = vsel %vm43, %v31, 0
  %47 = vmatprep.subr.mxu0 0.0
  %48 = vmatpush1.msra.mxu0 %v27
  %49 = vmatprep.subr.mxu0 0.0
  %50 = vmatpush1.msra.mxu0 %v28
  %51 = vmatprep.subr.mxu0 0.0
  %52 = vmatpush1.msra.mxu0 %v29
  %53 = vmatprep.subr.mxu0 0.0
  %54 = vmatpush1.msra.mxu0 %v30
  %55 = vmatprep.subr.mxu0 0.0
  %56 = vmatpush1.msra.mxu0 %v45
  %57 = vmatprep.subr.mxu0 0.0
  %58 = vmatpush1.msra.mxu0 0.0
  %59 = vmatprep.subr.mxu0 0.0
  %60 = vmatpush1.msra.mxu0 0.0
  %61 = vmatprep.subr.mxu0 0.0
  %62 = vmatpush1.msra.mxu0 0.0
  %63 = vmatprep.subr.mxu0 0.0
  %64 = vmatpush1.msra.mxu0 0.0
  %65 = vmatprep.subr.mxu0 0.0
  %66 = vmatpush1.msra.mxu0 0.0
  %67 = vmatprep.subr.mxu0 0.0
  %68 = vmatpush1.msra.mxu0 0.0
  %69 = vmatprep.subr.mxu0 0.0
  %70 = vmatpush1.msra.mxu0 0.0
  %71 = vmatprep.subr.mxu0 0.0
  %72 = vmatpush1.msra.mxu0 0.0
  %73 = vmatprep.subr.mxu0 0.0
  %74 = vmatpush1.msra.mxu0 0.0
  %75 = vmatprep.subr.mxu0 0.0
  %76 = vmatpush1.msra.mxu0 0.0
  %77 = vmatprep.subr.mxu0 0.0
  %78 = vmatpush1.msra.mxu0 0.0
  %79 = vmatprep.subr.mxu0 0.0
  %80 = vmatpush1.msra.mxu0 0.0
  %81 = vmatprep.subr.mxu0 0.0
  %82 = vmatpush1.msra.mxu0 0.0
  %83 = vmatprep.subr.mxu0 0.0
  %84 = vmatpush1.msra.mxu0 0.0
  %85 = vmatprep.subr.mxu0 0.0
  %86 = vmatpush1.msra.mxu0 0.0
  %87 = vmatprep.subr.mxu0 0.0
  %88 = vmatpush1.msra.mxu0 0.0
  %89 = vmatprep.subr.mxu0 0.0
  %90 = vmatpush1.msra.mxu0 0.0
  %91 = vmatprep.subr.mxu0 0.0
  %92 = vmatpush1.msra.mxu0 0.0
  %93 = vmatprep.subr.mxu0 0.0
  %94 = vmatpush1.msra.mxu0 0.0
  %95 = vmatprep.subr.mxu0 0.0
  %96 = vmatpush1.msra.mxu0 0.0
  %97 = vmatprep.subr.mxu0 0.0
  %98 = vmatpush1.msra.mxu0 0.0
  %99 = vmatprep.subr.mxu0 0.0
  %100 = vmatpush1.msra.mxu0 0.0
  %101 = vmatprep.subr.mxu0 0.0
  %102 = vmatpush1.msra.mxu0 0.0
  %103 = vmatprep.subr.mxu0 0.0
  %104 = vmatpush1.msra.mxu0 0.0
  %105 = vmatprep.subr.mxu0 0.0
  %106 = vmatpush1.msra.mxu0 0.0
  %107 = vmatprep.subr.mxu0 0.0
  %108 = vmatpush1.msra.mxu0 0.0
  %109 = vmatprep.subr.mxu0 0.0
  %110 = vmatpush1.msra.mxu0 0.0
  %111 = vmatprep.mubr.f32.mxu0 0.0
  %112 = vmatmul.mubr.f32.gmra.mrb[0].mxu0 %v41
  %v113 = vpop.f32.mrb[0].mxu0
  %v114 = vadd.f32 %v37, %v113
  %v115 = vpop.f32.mrb[0].mxu0
  %116 = vdwg.mxu0
  %v117 = vmax.f32 %v114, 0.0
  %v118 = vld [vmem:[%s3] sm:$0xff]
  %v119 = vld [vmem:[%s3 + $0x8] sm:$0xff]
  %v120 = vld [vmem:[%s3 + $0x10] sm:$0xff]
  %v121 = vld [vmem:[%s3 + $0x18] sm:$0xff]
  %v122 = vld [vmem:[%s3 + $0x20] sm:$0xff]
  %v123 = vld [vmem:[%s3 + $0x28] sm:$0xff]
  %v124 = vld [vmem:[%s3 + $0x30] sm:$0xff]
  %v125 = vld [vmem:[%s3 + $0x38] sm:$0xff]
  %v126 = vld [vmem:[%s3 + $0x40] sm:$0xff]
  %v127 = vld [vmem:[%s3 + $0x48] sm:$0xff]
  %v128 = vld [vmem:[%s3 + $0x50] sm:$0xff]
  %v129 = vld [vmem:[%s3 + $0x58] sm:$0xff]
  %v130 = vld [vmem:[%s3 + $0x60] sm:$0xff]
  %v131 = vld [vmem:[%s3 + $0x68] sm:$0xff]
  %v132 = vld [vmem:[%s3 + $0x70] sm:$0xff]
  %v133 = vld [vmem:[%s3 + $0x78] sm:$0xff]
  %v134 = vld [vmem:[%s4] sm:$0x1]
  %v136 = vlaneseq
  %v137 = vshrl.u32 %v136, 7
  %v138 = vsub.s32 0, %v137
  %v139 = vrot.slane %v134, %v138
  %141 = vmatprep.subr.mxu0 0.0
  %142 = vmatpush1.msra.mxu0 %v118
  %143 = vmatprep.subr.mxu0 0.0
  %144 = vmatpush1.msra.mxu0 %v119
  %145 = vmatprep.subr.mxu0 0.0
  %146 = vmatpush1.msra.mxu0 %v120
  %147 = vmatprep.subr.mxu0 0.0
  %148 = vmatpush1.msra.mxu0 %v121
  %149 = vmatprep.subr.mxu0 0.0
  %150 = vmatpush1.msra.mxu0 %v122
  %151 = vmatprep.subr.mxu0 0.0
  %152 = vmatpush1.msra.mxu0 %v123
  %153 = vmatprep.subr.mxu0 0.0
  %154 = vmatpush1.msra.mxu0 %v124
  %155 = vmatprep.subr.mxu0 0.0
  %156 = vmatpush1.msra.mxu0 %v125
  %157 = vmatprep.subr.mxu0 0.0
  %158 = vmatpush1.msra.mxu0 %v126
  %159 = vmatprep.subr.mxu0 0.0
  %160 = vmatpush1.msra.mxu0 %v127
  %161 = vmatprep.subr.mxu0 0.0
  %162 = vmatpush1.msra.mxu0 %v128
  %163 = vmatprep.subr.mxu0 0.0
  %164 = vmatpush1.msra.mxu0 %v129
  %165 = vmatprep.subr.mxu0 0.0
  %166 = vmatpush1.msra.mxu0 %v130
  %167 = vmatprep.subr.mxu0 0.0
  %168 = vmatpush1.msra.mxu0 %v131
  %169 = vmatprep.subr.mxu0 0.0
  %170 = vmatpush1.msra.mxu0 %v132
  %171 = vmatprep.subr.mxu0 0.0
  %172 = vmatpush1.msra.mxu0 %v133
  %173 = vmatprep.subr.mxu0 0.0
  %174 = vmatpush1.msra.mxu0 0.0
  %175 = vmatprep.subr.mxu0 0.0
  %176 = vmatpush1.msra.mxu0 0.0
  %177 = vmatprep.subr.mxu0 0.0
  %178 = vmatpush1.msra.mxu0 0.0
  %179 = vmatprep.subr.mxu0 0.0
  %180 = vmatpush1.msra.mxu0 0.0
  %181 = vmatprep.subr.mxu0 0.0
  %182 = vmatpush1.msra.mxu0 0.0
  %183 = vmatprep.subr.mxu0 0.0
  %184 = vmatpush1.msra.mxu0 0.0
  %185 = vmatprep.subr.mxu0 0.0
  %186 = vmatpush1.msra.mxu0 0.0
  %187 = vmatprep.subr.mxu0 0.0
  %188 = vmatpush1.msra.mxu0 0.0
  %189 = vmatprep.subr.mxu0 0.0
  %190 = vmatpush1.msra.mxu0 0.0
  %191 = vmatprep.subr.mxu0 0.0
  %192 = vmatpush1.msra.mxu0 0.0
  %193 = vmatprep.subr.mxu0 0.0
  %194 = vmatpush1.msra.mxu0 0.0
  %195 = vmatprep.subr.mxu0 0.0
  %196 = vmatpush1.msra.mxu0 0.0
  %197 = vmatprep.subr.mxu0 0.0
  %198 = vmatpush1.msra.mxu0 0.0
  %199 = vmatprep.subr.mxu0 0.0
  %200 = vmatpush1.msra.mxu0 0.0
  %201 = vmatprep.subr.mxu0 0.0
  %202 = vmatpush1.msra.mxu0 0.0
  %203 = vmatprep.subr.mxu0 0.0
  %204 = vmatpush1.msra.mxu0 0.0
  %205 = vmatprep.mubr.f32.mxu0 0.0
  %206 = vmatmul.mubr.f32.gmra.mrb[0].mxu0 %v117
  %v207 = vpop.f32.mrb[0].mxu0
  %v208 = vadd.f32 %v139, %v207
  %v209 = vpop.f32.mrb[0].mxu0
  %210 = vdwg.mxu0
  %v211 = vmax.f32 %v208, 0.0
  %v212 = vld [vmem:[%s5] sm:$0xff]
  %v213 = vld [vmem:[%s5 + $0x8] sm:$0xff]
  %v214 = vld [vmem:[%s5 + $0x10] sm:$0xff]
  %v215 = vld [vmem:[%s5 + $0x18] sm:$0xff]
  %v216 = vld [vmem:[%s5 + $0x20] sm:$0xff]
  %v217 = vld [vmem:[%s5 + $0x28] sm:$0xff]
  %v218 = vld [vmem:[%s5 + $0x30] sm:$0xff]
  %v219 = vld [vmem:[%s5 + $0x38] sm:$0xff]
  %v220 = vld [vmem:[%s6] sm:$0x1]
  %v222 = vlaneseq
  %v223 = vshrl.u32 %v222, 7
  %v224 = vsub.s32 0, %v223
  %v225 = vrot.slane %v220, %v224
  %vm227 = vcmask 523264
  %v229 = vsel %vm227, %v211, 0
  %231 = vmatprep.subr.mxu0 0.0
  %232 = vmatpush1.msra.mxu0 %v212
  %233 = vmatprep.subr.mxu0 0.0
  %234 = vmatpush1.msra.mxu0 %v213
  %235 = vmatprep.subr.mxu0 0.0
  %236 = vmatpush1.msra.mxu0 %v214
  %237 = vmatprep.subr.mxu0 0.0
  %238 = vmatpush1.msra.mxu0 %v215
  %239 = vmatprep.subr.mxu0 0.0
  %240 = vmatpush1.msra.mxu0 %v216
  %241 = vmatprep.subr.mxu0 0.0
  %242 = vmatpush1.msra.mxu0 %v217
  %243 = vmatprep.subr.mxu0 0.0
  %244 = vmatpush1.msra.mxu0 %v218
  %245 = vmatprep.subr.mxu0 0.0
  %246 = vmatpush1.msra.mxu0 %v219
  %247 = vmatprep.subr.mxu0 0.0
  %248 = vmatpush1.msra.mxu0 0.0
  %249 = vmatprep.subr.mxu0 0.0
  %250 = vmatpush1.msra.mxu0 0.0
  %251 = vmatprep.subr.mxu0 0.0
  %252 = vmatpush1.msra.mxu0 0.0
  %253 = vmatprep.subr.mxu0 0.0
  %254 = vmatpush1.msra.mxu0 0.0
  %255 = vmatprep.subr.mxu0 0.0
  %256 = vmatpush1.msra.mxu0 0.0
  %257 = vmatprep.subr.mxu0 0.0
  %258 = vmatpush1.msra.mxu0 0.0
  %259 = vmatprep.subr.mxu0 0.0
  %260 = vmatpush1.msra.mxu0 0.0
  %261 = vmatprep.subr.mxu0 0.0
  %262 = vmatpush1.msra.mxu0 0.0
  %263 = vmatprep.subr.mxu0 0.0
  %264 = vmatpush1.msra.mxu0 0.0
  %265 = vmatprep.subr.mxu0 0.0
  %266 = vmatpush1.msra.mxu0 0.0
  %267 = vmatprep.subr.mxu0 0.0
  %268 = vmatpush1.msra.mxu0 0.0
  %269 = vmatprep.subr.mxu0 0.0
  %270 = vmatpush1.msra.mxu0 0.0
  %271 = vmatprep.subr.mxu0 0.0
  %272 = vmatpush1.msra.mxu0 0.0
  %273 = vmatprep.subr.mxu0 0.0
  %274 = vmatpush1.msra.mxu0 0.0
  %275 = vmatprep.subr.mxu0 0.0
  %276 = vmatpush1.msra.mxu0 0.0
  %277 = vmatprep.subr.mxu0 0.0
  %278 = vmatpush1.msra.mxu0 0.0
  %279 = vmatprep.subr.mxu0 0.0
  %280 = vmatpush1.msra.mxu0 0.0
  %281 = vmatprep.subr.mxu0 0.0
  %282 = vmatpush1.msra.mxu0 0.0
  %283 = vmatprep.subr.mxu0 0.0
  %284 = vmatpush1.msra.mxu0 0.0
  %285 = vmatprep.subr.mxu0 0.0
  %286 = vmatpush1.msra.mxu0 0.0
  %287 = vmatprep.subr.mxu0 0.0
  %288 = vmatpush1.msra.mxu0 0.0
  %289 = vmatprep.subr.mxu0 0.0
  %290 = vmatpush1.msra.mxu0 0.0
  %291 = vmatprep.subr.mxu0 0.0
  %292 = vmatpush1.msra.mxu0 0.0
  %293 = vmatprep.subr.mxu0 0.0
  %294 = vmatpush1.msra.mxu0 0.0
  %295 = vmatprep.mubr.f32.mxu0 0.0
  %296 = vmatmul.mubr.f32.gmra.mrb[0].mxu0 %v229
  %v297 = vpop.f32.mrb[0].mxu0
  %v298 = vadd.f32 %v225, %v297
  %v299 = vpop.f32.mrb[0].mxu0
  %300 = vdwg.mxu0
  %vm301 = vcmask 31744
  %302 = vst.msk [vmem:[%s7] sm:$0xff] %vm301, %v298
  // Predicated region
  $region30: #{qnetwork_forward.1} parent=0 // pred_check
    _
  $region31: #{qnetwork_forward.1} parent=0 // pred_check_branch
    %304 = sbr.rel (0) target = $region33
  $region32: #{qnetwork_forward.1} parent=0 // pred_region
    _
  $region33: #{qnetwork_forward.1} parent=0 // pred_fallthru
    _
  // Predicated region
  $region34: #{qnetwork_forward.1} parent=0 // pred_check
    _
  $region35: #{qnetwork_forward.1} parent=0 // pred_check_branch
    %306 = sbr.rel (0) target = $region37
  $region36: #{qnetwork_forward.1} parent=0 // pred_region
    _
  $region37: #{qnetwork_forward.1} parent=0 // pred_fallthru
    _

</llo_original>
